<compile_context>
chip_gen: v6e
topology: v6e:2x2x1
jax: 0.10.0
libtpu: 0.0.40
codegen_flags: <defaults>
</compile_context>

<pallas_src>
import jax
import jax.numpy as jnp
from jax.experimental import pallas as pl
from jax.experimental.pallas import tpu as pltpu


def _segment_a_kernel(x_ref, w_ref, b_ref, o_ref):
    # VPU: square in f32, cast to bf16 for the MXU.
    x = x_ref[...]
    xsq = (x * x).astype(jnp.bfloat16)
    # MXU: (tm, K) bf16 x (K, N) bf16 -> f32 accumulate. Canonical layout,
    # no per-step transpose needed.
    acc = jnp.dot(xsq, w_ref[...], preferred_element_type=jnp.float32)
    o_ref[...] = (acc + b_ref[...]).astype(o_ref.dtype)


def _round_up(v: int, m: int) -> int:
    return ((v + m - 1) // m) * m


def _choose_tm(B: int) -> int:
    # Tiny batches: single whole-batch block (full-dim exception, no padding;
    # this regime is overhead-dominated anyway).
    if B <= 64:
        return B
    # Moderate batches: guarantee >= 2 grid steps so v7x's 2 TensorCores
    # both get work (harmless on v5e/v6e), tile rounded to a sublane multiple.
    if B <= 4096:
        return min(2048, _round_up(pl.cdiv(B, 2), 8))
    # Large batches: 2048-row tiles amortize the ~0.35 us per-step overhead
    # and keep DMA efficiency near the HBM roofline, while bounding per-step
    # VMEM (~18 MiB double-buffered incl. bf16 temporaries).
    return 2048


def model_segment_a(x, weight, bias):
    """Computes Linear(784->128)(x**2).

    x:      (B, 784) float32
    weight: (128, 784) float32  (PyTorch nn.Linear layout)
    bias:   (128,)    float32
    returns (B, 128)  float32
    """
    B, K = x.shape
    N = weight.shape[0]

    # One-time wrapper-side prep (fused by XLA): bf16 cast + transpose to
    # (K, N) so the kernel's matmul is in canonical MXU layout.  ~200 KB.
    w_t = jnp.transpose(weight).astype(jnp.bfloat16)      # (K, N) bf16
    b2d = bias.reshape(1, N)                               # (1, N) f32, metadata-only

    tm = _choose_tm(B)
    grid = (pl.cdiv(B, tm),)

    cost = pl.CostEstimate(
        flops=2 * B * K * N + B * K,                       # matmul + square
        transcendentals=0,
        bytes_accessed=B * K * 4 + N * K * 2 + N * 4 + B * N * 4,
    )

    return pl.pallas_call(
        _segment_a_kernel,
        out_shape=jax.ShapeDtypeStruct((B, N), jnp.float32),
        grid_spec=pltpu.PrefetchScalarGridSpec(
            num_scalar_prefetch=0,
            grid=grid,
            in_specs=[
                pl.BlockSpec((tm, K), lambda i: (i, 0)),   # x tile walks batch
                pl.BlockSpec((K, N), lambda i: (0, 0)),    # weight resident (K,N) bf16
                pl.BlockSpec((1, N), lambda i: (0, 0)),    # bias resident
            ],
            out_specs=pl.BlockSpec((tm, N), lambda i: (i, 0)),
        ),
        compiler_params=pltpu.CompilerParams(
            dimension_semantics=("parallel",),             # megacore on v7x
            vmem_limit_bytes=48 << 20,                     # room for TM=2048 on v7x
        ),
        cost_estimate=cost,
    )(x, w_t, b2d)


if __name__ == "__main__":
    key = jax.random.PRNGKey(0)
    k_x, k_w, k_b = jax.random.split(key, 3)

    B, K, N = 8, 784, 128

    # Deterministic parameter init (mimics nn.Linear default: U(-1/sqrt(K), 1/sqrt(K)))
    bound = 1.0 / jnp.sqrt(jnp.float32(K))
    weight = jax.random.uniform(k_w, (N, K), jnp.float32, -bound, bound)
    bias = jax.random.uniform(k_b, (N,), jnp.float32, -bound, bound)

    x = jax.random.normal(k_x, (B, K), jnp.float32)

    out = model_segment_a(x, weight, bias)
    out = jax.block_until_ready(out)

    # Reference in plain JAX (f32).  bf16 MXU operands with f32 accumulation
    # give ~1e-3 relative error, so compare with a loose tolerance.
    ref = (x ** 2) @ weight.T + bias
    assert out.shape == (B, N)
    assert jnp.allclose(out, ref, atol=3e-2, rtol=3e-2), (
        float(jnp.max(jnp.abs(out - ref))))

    print("KERNEL_OK")
</pallas_src>

<mosaic_0001>
module attributes {stable_mosaic.version = 11 : i64} {
  func.func @_segment_a_kernel(%arg0: i32, %arg1: memref<8x784xf32, #tpu.memory_space<vmem>>, %arg2: memref<784x128xbf16, #tpu.memory_space<vmem>>, %arg3: memref<1x128xf32, #tpu.memory_space<vmem>>, %arg4: memref<8x128xf32, #tpu.memory_space<vmem>>) attributes {dimension_semantics = [#tpu.dimension_semantics<parallel>], iteration_bounds = array<i64: 1>, scalar_prefetch = 0 : i64, scratch_operands = 0 : i64, tpu.core_type = #tpu.core_type<tc>, window_params = [{transform_indices = @transform_0, window_bounds = array<i64: 8, 784>}, {pipeline_mode = #tpu.pipeline_mode<synchronous>, transform_indices = @transform_1, window_bounds = array<i64: 784, 128>}, {pipeline_mode = #tpu.pipeline_mode<synchronous>, transform_indices = @transform_2, window_bounds = array<i64: 1, 128>}, {transform_indices = @transform_3, window_bounds = array<i64: 8, 128>}]} {
    %c0 = arith.constant 0 : index
    %c0_0 = arith.constant 0 : index
    %0 = vector.load %arg1[%c0, %c0_0] : memref<8x784xf32, #tpu.memory_space<vmem>>, vector<8x784xf32>
    %1 = arith.mulf %0, %0 : vector<8x784xf32>
    %2 = arith.truncf %1 : vector<8x784xf32> to vector<8x784xbf16>
    %c0_1 = arith.constant 0 : index
    %c0_2 = arith.constant 0 : index
    %3 = vector.load %arg2[%c0_1, %c0_2] : memref<784x128xbf16, #tpu.memory_space<vmem>>, vector<784x128xbf16>
    %cst = arith.constant dense<0.000000e+00> : vector<8x128xf32>
    %4 = tpu.matmul %2, %3, %cst {dimension_numbers = #tpu.dot_dimension_numbers<[1], [0], [0], [1], [0, 0, 1, 1], [], []>} : vector<8x784xbf16>, vector<784x128xbf16>, vector<8x128xf32> -> vector<8x128xf32>
    %c0_3 = arith.constant 0 : index
    %c0_4 = arith.constant 0 : index
    %5 = vector.load %arg3[%c0_3, %c0_4] : memref<1x128xf32, #tpu.memory_space<vmem>>, vector<1x128xf32>
    %6 = vector.broadcast %5 : vector<1x128xf32> to vector<8x128xf32>
    %7 = arith.addf %4, %6 : vector<8x128xf32>
    %c0_5 = arith.constant 0 : index
    %c0_6 = arith.constant 0 : index
    %8 = vector.load %arg4[%c0_5, %c0_6] : memref<8x128xf32, #tpu.memory_space<vmem>>, vector<8x128xf32>
    tpu.vector_store %arg4[%c0_5, %c0_6], %7 {strides = array<i32>} : memref<8x128xf32, #tpu.memory_space<vmem>>, vector<8x128xf32>,
    return
  }
  func.func @transform_0(%arg0: i32) -> (i32, i32) {
    %c0_i32 = arith.constant 0 : i32
    %c0_i32_0 = arith.constant 0 : i32
    return %arg0, %c0_i32 : i32, i32
  }
  func.func @transform_1(%arg0: i32) -> (i32, i32) {
    %c0_i32 = arith.constant 0 : i32
    %c0_i32_0 = arith.constant 0 : i32
    %c0_i32_1 = arith.constant 0 : i32
    return %c0_i32, %c0_i32_0 : i32, i32
  }
  func.func @transform_2(%arg0: i32) -> (i32, i32) {
    %c0_i32 = arith.constant 0 : i32
    %c0_i32_0 = arith.constant 0 : i32
    %c0_i32_1 = arith.constant 0 : i32
    return %c0_i32, %c0_i32_0 : i32, i32
  }
  func.func @transform_3(%arg0: i32) -> (i32, i32) {
    %c0_i32 = arith.constant 0 : i32
    %c0_i32_0 = arith.constant 0 : i32
    return %arg0, %c0_i32 : i32, i32
  }
}

</mosaic_0001>

<llo_original>
// kernel: tpu_custom_call.1
$region0: #{tpu_custom_call.1}
  #allocation0 [shape = 'u32[]', space=smem, size = 0x4, offset = 0x4, fixed_abs, tag = 'smem constant byte address 0x4 - core index']
  #allocation1 [shape = 'u32[144,128]{1,0:T(1,128)}', space=vmem, size = 0x12000, scoped, tag = 'internal scratch']
  %s0 = inlined_call_operand.hbm [shape: f32[8,784], index: 0, kind: input, shape index: {}]
  %s1 = inlined_call_operand.hbm [shape: bf16[784,128], index: 1, kind: input, shape index: {}]
  %s2 = inlined_call_operand.vmem [shape: f32[1,128], index: 2, kind: input, shape index: {}]
  %s3 = inlined_call_operand.hbm [shape: f32[8,128], index: 3, kind: output, shape index: {}]
  %s4 = sld [smem:[#allocation0]]
  $region30: #{tpu_custom_call.1} parent=0
    _
  %s6 = ssub.s32 1, %s4
  %s7 = scalar_select 0, %s6, %s4
  $region1: #{tpu_custom_call.1} parent=0
    #allocation2 [shape = 'u8[28672]{0}', space=vmem, size = 0x7000, scoped, tag = 'input window, operand 0, single buffered']
    #allocation3 [shape = 's32[1]{0}', space=sflag, size = 0x4, scoped, tag = 'scoped memory for tpu_custom_call.1']
    #allocation4 [shape = 's32[1]{0}', space=sflag, size = 0x4, scoped, tag = 'scoped memory for tpu_custom_call.1']
    #allocation5 [shape = 'u8[200704]{0}', space=vmem, size = 0x31000, scoped, tag = 'input window, operand 1, single buffered']
    #allocation6 [shape = 's32[1]{0}', space=sflag, size = 0x4, scoped, tag = 'scoped memory for tpu_custom_call.1']
    #allocation7 [shape = 'u8[4096]{0}', space=vmem, size = 0x1000, scoped, tag = 'output window, operand 0, single buffered']
    %8 = vsyncpa [#allocation3], 0
    %9 = vsyncpa [#allocation6], 0
    %10 = vsyncpa [#allocation4], 0
    // Predicated region
    $region2: #{tpu_custom_call.1} parent=1 // pred_check
      _
    $region3: #{tpu_custom_call.1} parent=1 // pred_check_branch
      %12 = sbr.rel (0) target = $region5
    $region4: #{tpu_custom_call.1} parent=1 // pred_region
      %s14 = ssub.s32 896, 896
      %15 = vsyncadd [#allocation3], %s14
      %s17 = sshll.u32 [#allocation2], 4
      %s18 = int_to_ptr.vmem [resolvable:$true] %s17
      %20 = dma.hbm_to_vmem [thread:$0]  %s0, 896, %s18, [#allocation3]
    $region5: #{tpu_custom_call.1} parent=1 // pred_fallthru
      _
    // Predicated region
    $region6: #{tpu_custom_call.1} parent=1 // pred_check
      _
    $region7: #{tpu_custom_call.1} parent=1 // pred_check_branch
      %22 = sbr.rel (0) target = $region9
    $region8: #{tpu_custom_call.1} parent=1 // pred_region
      %s24 = ssub.s32 6272, 6272
      %25 = vsyncadd [#allocation6], %s24
      %s26 = sshll.u32 [#allocation5], 4
      %s27 = int_to_ptr.vmem [resolvable:$true] %s26
      %32 = dma.hbm_to_vmem [thread:$0]  %s1, 6272, %s27, [#allocation6], 64, 64, 4
    $region9: #{tpu_custom_call.1} parent=1 // pred_fallthru
      _
    // Predicated region
    $region10: #{tpu_custom_call.1} parent=1 // pred_check
      _
    $region11: #{tpu_custom_call.1} parent=1 // pred_check_branch
      %34 = sbr.rel (0) target = $region13
    $region12: #{tpu_custom_call.1} parent=1 // pred_region
      _
    $region13: #{tpu_custom_call.1} parent=1 // pred_fallthru
      _
    // Predicated region
    $region14: #{tpu_custom_call.1} parent=1 // pred_check
      _
    $region15: #{tpu_custom_call.1} parent=1 // pred_check_branch
      %36 = sbr.rel (0) target = $region17
    $region16: #{tpu_custom_call.1} parent=1 // pred_region
      %37 = dma.done [#allocation3], 896
    $region17: #{tpu_custom_call.1} parent=1 // pred_fallthru
      _
    // Predicated region
    $region18: #{tpu_custom_call.1} parent=1 // pred_check
      _
    $region19: #{tpu_custom_call.1} parent=1 // pred_check_branch
      %39 = sbr.rel (0) target = $region21
    $region20: #{tpu_custom_call.1} parent=1 // pred_region
      %40 = dma.done [#allocation6], 6272
    $region21: #{tpu_custom_call.1} parent=1 // pred_fallthru
      _
    %v42 = vld [vmem:[#allocation2] sm:$0xff]
    %v43 = vld [vmem:[#allocation2 + $0x8] sm:$0xff]
    %v44 = vld [vmem:[#allocation2 + $0x10] sm:$0xff]
    %v45 = vld [vmem:[#allocation2 + $0x18] sm:$0xff]
    %v46 = vld [vmem:[#allocation2 + $0x20] sm:$0xff]
    %v47 = vld [vmem:[#allocation2 + $0x28] sm:$0xff]
    %v48 = vld [vmem:[#allocation2 + $0x30] sm:$0xff]
    %v49 = vmul.f32 %v42, %v42
    %v50 = vmul.f32 %v43, %v43
    %v51 = vmul.f32 %v44, %v44
    %v52 = vmul.f32 %v45, %v45
    %v53 = vmul.f32 %v46, %v46
    %v54 = vmul.f32 %v47, %v47
    %v55 = vmul.f32 %v48, %v48
    %v56 = vpack.c.bf16 %v49, %v49
    %v57 = vpack.c.bf16 %v50, %v50
    %v58 = vpack.c.bf16 %v51, %v51
    %v59 = vpack.c.bf16 %v52, %v52
    %v60 = vpack.c.bf16 %v53, %v53
    %v61 = vpack.c.bf16 %v54, %v54
    %v62 = vpack.c.bf16 %v55, %v55
    %v63 = vld [vmem:[#allocation5] sm:$0xf]
    %v64 = vld [vmem:[#allocation5 + $0x4] sm:$0xf]
    %v65 = vld [vmem:[#allocation5 + $0x8] sm:$0xf]
    %v66 = vld [vmem:[#allocation5 + $0xc] sm:$0xf]
    %v67 = vld [vmem:[#allocation5 + $0x10] sm:$0xf]
    %v68 = vld [vmem:[#allocation5 + $0x14] sm:$0xf]
    %v69 = vld [vmem:[#allocation5 + $0x18] sm:$0xf]
    %v70 = vld [vmem:[#allocation5 + $0x1c] sm:$0xf]
    %v71 = vld [vmem:[#allocation5 + $0x20] sm:$0xf]
    %v72 = vld [vmem:[#allocation5 + $0x24] sm:$0xf]
    %v73 = vld [vmem:[#allocation5 + $0x28] sm:$0xf]
    %v74 = vld [vmem:[#allocation5 + $0x2c] sm:$0xf]
    %v75 = vld [vmem:[#allocation5 + $0x30] sm:$0xf]
    %v76 = vld [vmem:[#allocation5 + $0x34] sm:$0xf]
    %v77 = vld [vmem:[#allocation5 + $0x38] sm:$0xf]
    %v78 = vld [vmem:[#allocation5 + $0x3c] sm:$0xf]
    %v79 = vld [vmem:[#allocation5 + $0x40] sm:$0xf]
    %v80 = vld [vmem:[#allocation5 + $0x44] sm:$0xf]
    %v81 = vld [vmem:[#allocation5 + $0x48] sm:$0xf]
    %v82 = vld [vmem:[#allocation5 + $0x4c] sm:$0xf]
    %v83 = vld [vmem:[#allocation5 + $0x50] sm:$0xf]
    %v84 = vld [vmem:[#allocation5 + $0x54] sm:$0xf]
    %v85 = vld [vmem:[#allocation5 + $0x58] sm:$0xf]
    %v86 = vld [vmem:[#allocation5 + $0x5c] sm:$0xf]
    %v87 = vld [vmem:[#allocation5 + $0x60] sm:$0xf]
    %v88 = vld [vmem:[#allocation5 + $0x64] sm:$0xf]
    %v89 = vld [vmem:[#allocation5 + $0x68] sm:$0xf]
    %v90 = vld [vmem:[#allocation5 + $0x6c] sm:$0xf]
    %v91 = vld [vmem:[#allocation5 + $0x70] sm:$0xf]
    %v92 = vld [vmem:[#allocation5 + $0x74] sm:$0xf]
    %v93 = vld [vmem:[#allocation5 + $0x78] sm:$0xf]
    %v94 = vld [vmem:[#allocation5 + $0x7c] sm:$0xf]
    %v95 = vld [vmem:[#allocation5 + $0x80] sm:$0xf]
    %v96 = vld [vmem:[#allocation5 + $0x84] sm:$0xf]
    %v97 = vld [vmem:[#allocation5 + $0x88] sm:$0xf]
    %v98 = vld [vmem:[#allocation5 + $0x8c] sm:$0xf]
    %v99 = vld [vmem:[#allocation5 + $0x90] sm:$0xf]
    %v100 = vld [vmem:[#allocation5 + $0x94] sm:$0xf]
    %v101 = vld [vmem:[#allocation5 + $0x98] sm:$0xf]
    %v102 = vld [vmem:[#allocation5 + $0x9c] sm:$0xf]
    %v103 = vld [vmem:[#allocation5 + $0xa0] sm:$0xf]
    %v104 = vld [vmem:[#allocation5 + $0xa4] sm:$0xf]
    %v105 = vld [vmem:[#allocation5 + $0xa8] sm:$0xf]
    %v106 = vld [vmem:[#allocation5 + $0xac] sm:$0xf]
    %v107 = vld [vmem:[#allocation5 + $0xb0] sm:$0xf]
    %v108 = vld [vmem:[#allocation5 + $0xb4] sm:$0xf]
    %v109 = vld [vmem:[#allocation5 + $0xb8] sm:$0xf]
    %v110 = vld [vmem:[#allocation5 + $0xbc] sm:$0xf]
    %v111 = vld [vmem:[#allocation5 + $0xc0] sm:$0xf]
    %v112 = vld [vmem:[#allocation5 + $0xc4] sm:$0xf]
    %v113 = vld [vmem:[#allocation5 + $0xc8] sm:$0xf]
    %v114 = vld [vmem:[#allocation5 + $0xcc] sm:$0xf]
    %v115 = vld [vmem:[#allocation5 + $0xd0] sm:$0xf]
    %v116 = vld [vmem:[#allocation5 + $0xd4] sm:$0xf]
    %v117 = vld [vmem:[#allocation5 + $0xd8] sm:$0xf]
    %v118 = vld [vmem:[#allocation5 + $0xdc] sm:$0xf]
    %v119 = vld [vmem:[#allocation5 + $0xe0] sm:$0xf]
    %v120 = vld [vmem:[#allocation5 + $0xe4] sm:$0xf]
    %v121 = vld [vmem:[#allocation5 + $0xe8] sm:$0xf]
    %v122 = vld [vmem:[#allocation5 + $0xec] sm:$0xf]
    %v123 = vld [vmem:[#allocation5 + $0xf0] sm:$0xf]
    %v124 = vld [vmem:[#allocation5 + $0xf4] sm:$0xf]
    %v125 = vld [vmem:[#allocation5 + $0xf8] sm:$0xf]
    %v126 = vld [vmem:[#allocation5 + $0xfc] sm:$0xf]
    %v127 = vld [vmem:[#allocation5 + $0x100] sm:$0xf]
    %v128 = vld [vmem:[#allocation5 + $0x104] sm:$0xf]
    %v129 = vld [vmem:[#allocation5 + $0x108] sm:$0xf]
    %v130 = vld [vmem:[#allocation5 + $0x10c] sm:$0xf]
    %v131 = vld [vmem:[#allocation5 + $0x110] sm:$0xf]
    %v132 = vld [vmem:[#allocation5 + $0x114] sm:$0xf]
    %v133 = vld [vmem:[#allocation5 + $0x118] sm:$0xf]
    %v134 = vld [vmem:[#allocation5 + $0x11c] sm:$0xf]
    %v135 = vld [vmem:[#allocation5 + $0x120] sm:$0xf]
    %v136 = vld [vmem:[#allocation5 + $0x124] sm:$0xf]
    %v137 = vld [vmem:[#allocation5 + $0x128] sm:$0xf]
    %v138 = vld [vmem:[#allocation5 + $0x12c] sm:$0xf]
    %v139 = vld [vmem:[#allocation5 + $0x130] sm:$0xf]
    %v140 = vld [vmem:[#allocation5 + $0x134] sm:$0xf]
    %v141 = vld [vmem:[#allocation5 + $0x138] sm:$0xf]
    %v142 = vld [vmem:[#allocation5 + $0x13c] sm:$0xf]
    %v143 = vld [vmem:[#allocation5 + $0x140] sm:$0xf]
    %v144 = vld [vmem:[#allocation5 + $0x144] sm:$0xf]
    %v145 = vld [vmem:[#allocation5 + $0x148] sm:$0xf]
    %v146 = vld [vmem:[#allocation5 + $0x14c] sm:$0xf]
    %v147 = vld [vmem:[#allocation5 + $0x150] sm:$0xf]
    %v148 = vld [vmem:[#allocation5 + $0x154] sm:$0xf]
    %v149 = vld [vmem:[#allocation5 + $0x158] sm:$0xf]
    %v150 = vld [vmem:[#allocation5 + $0x15c] sm:$0xf]
    %v151 = vld [vmem:[#allocation5 + $0x160] sm:$0xf]
    %v152 = vld [vmem:[#allocation5 + $0x164] sm:$0xf]
    %v153 = vld [vmem:[#allocation5 + $0x168] sm:$0xf]
    %v154 = vld [vmem:[#allocation5 + $0x16c] sm:$0xf]
    %v155 = vld [vmem:[#allocation5 + $0x170] sm:$0xf]
    %v156 = vld [vmem:[#allocation5 + $0x174] sm:$0xf]
    %v157 = vld [vmem:[#allocation5 + $0x178] sm:$0xf]
    %v158 = vld [vmem:[#allocation5 + $0x17c] sm:$0xf]
    %v159 = vld [vmem:[#allocation5 + $0x180] sm:$0xf]
    %v160 = vld [vmem:[#allocation5 + $0x184] sm:$0xf]
    %v161 = vld [vmem:[%s2] sm:$0x1]
    %v163 = vlaneseq
    %v164 = vshrl.u32 %v163, 7
    %v165 = vsub.s32 0, %v164
    %v166 = vrot.slane %v161, %v165
    %v266 = vunpack.c.l.b16 %v63
    %v267 = vunpack.c.l.b16 %v64
    %v268 = vunpack.c.l.b16 %v65
    %v269 = vunpack.c.l.b16 %v66
    %v270 = vunpack.c.l.b16 %v67
    %v271 = vunpack.c.l.b16 %v68
    %v272 = vunpack.c.l.b16 %v69
    %v273 = vunpack.c.l.b16 %v70
    %v274 = vunpack.c.l.b16 %v71
    %v275 = vunpack.c.l.b16 %v72
    %v276 = vunpack.c.l.b16 %v73
    %v277 = vunpack.c.l.b16 %v74
    %v278 = vunpack.c.l.b16 %v75
    %v279 = vunpack.c.l.b16 %v76
    %v280 = vunpack.c.l.b16 %v77
    %v281 = vunpack.c.l.b16 %v78
    %v282 = vunpack.c.l.b16 %v79
    %v283 = vunpack.c.l.b16 %v80
    %v284 = vunpack.c.l.b16 %v81
    %v285 = vunpack.c.l.b16 %v82
    %v286 = vunpack.c.l.b16 %v83
    %v287 = vunpack.c.l.b16 %v84
    %v288 = vunpack.c.l.b16 %v85
    %v289 = vunpack.c.l.b16 %v86
    %v290 = vunpack.c.l.b16 %v87
    %v291 = vunpack.c.l.b16 %v88
    %v292 = vunpack.c.l.b16 %v89
    %v293 = vunpack.c.l.b16 %v90
    %v294 = vunpack.c.l.b16 %v91
    %v295 = vunpack.c.l.b16 %v92
    %v296 = vunpack.c.l.b16 %v93
    %v297 = vunpack.c.l.b16 %v94
    %v298 = vunpack.c.l.b16 %v95
    %v299 = vunpack.c.l.b16 %v96
    %v300 = vunpack.c.l.b16 %v97
    %v301 = vunpack.c.l.b16 %v98
    %v302 = vunpack.c.l.b16 %v99
    %v303 = vunpack.c.l.b16 %v100
    %v304 = vunpack.c.l.b16 %v101
    %v305 = vunpack.c.l.b16 %v102
    %v306 = vunpack.c.l.b16 %v103
    %v307 = vunpack.c.l.b16 %v104
    %v308 = vunpack.c.l.b16 %v105
    %v309 = vunpack.c.l.b16 %v106
    %v310 = vunpack.c.l.b16 %v107
    %v311 = vunpack.c.l.b16 %v108
    %v312 = vunpack.c.l.b16 %v109
    %v313 = vunpack.c.l.b16 %v110
    %v314 = vunpack.c.l.b16 %v111
    %v315 = vunpack.c.l.b16 %v112
    %v316 = vunpack.c.l.b16 %v113
    %v317 = vunpack.c.l.b16 %v114
    %v318 = vunpack.c.l.b16 %v115
    %v319 = vunpack.c.l.b16 %v116
    %v320 = vunpack.c.l.b16 %v117
    %v321 = vunpack.c.l.b16 %v118
    %v322 = vunpack.c.l.b16 %v119
    %v323 = vunpack.c.l.b16 %v120
    %v324 = vunpack.c.l.b16 %v121
    %v325 = vunpack.c.l.b16 %v122
    %v326 = vunpack.c.l.b16 %v123
    %v327 = vunpack.c.l.b16 %v124
    %v328 = vunpack.c.l.b16 %v125
    %v329 = vunpack.c.l.b16 %v126
    %v330 = vunpack.c.l.b16 %v127
    %v331 = vunpack.c.l.b16 %v128
    %v332 = vunpack.c.l.b16 %v129
    %v333 = vunpack.c.l.b16 %v130
    %v334 = vunpack.c.l.b16 %v131
    %v335 = vunpack.c.l.b16 %v132
    %v336 = vunpack.c.l.b16 %v133
    %v337 = vunpack.c.l.b16 %v134
    %v338 = vunpack.c.l.b16 %v135
    %v339 = vunpack.c.l.b16 %v136
    %v340 = vunpack.c.l.b16 %v137
    %v341 = vunpack.c.l.b16 %v138
    %v342 = vunpack.c.l.b16 %v139
    %v343 = vunpack.c.l.b16 %v140
    %v344 = vunpack.c.l.b16 %v141
    %v345 = vunpack.c.l.b16 %v142
    %v346 = vunpack.c.l.b16 %v143
    %v347 = vunpack.c.l.b16 %v144
    %v348 = vunpack.c.l.b16 %v145
    %v349 = vunpack.c.l.b16 %v146
    %v350 = vunpack.c.l.b16 %v147
    %v351 = vunpack.c.l.b16 %v148
    %v352 = vunpack.c.l.b16 %v149
    %v353 = vunpack.c.l.b16 %v150
    %v354 = vunpack.c.l.b16 %v151
    %v355 = vunpack.c.l.b16 %v152
    %v356 = vunpack.c.l.b16 %v153
    %v357 = vunpack.c.l.b16 %v154
    %v358 = vunpack.c.l.b16 %v155
    %v359 = vunpack.c.l.b16 %v156
    %v360 = vunpack.c.l.b16 %v157
    %v361 = vunpack.c.l.b16 %v158
    %v362 = vunpack.c.l.b16 %v159
    %v363 = vunpack.c.l.b16 %v160
    %v364 = vpack.c.b16 %v267, %v266
    %v365 = vpack.c.b16 %v269, %v268
    %v366 = vpack.c.b16 %v271, %v270
    %v367 = vpack.c.b16 %v273, %v272
    %v368 = vpack.c.b16 %v275, %v274
    %v369 = vpack.c.b16 %v277, %v276
    %v370 = vpack.c.b16 %v279, %v278
    %v371 = vpack.c.b16 %v281, %v280
    %v372 = vpack.c.b16 %v283, %v282
    %v373 = vpack.c.b16 %v285, %v284
    %v374 = vpack.c.b16 %v287, %v286
    %v375 = vpack.c.b16 %v289, %v288
    %v376 = vpack.c.b16 %v291, %v290
    %v377 = vpack.c.b16 %v293, %v292
    %v378 = vpack.c.b16 %v295, %v294
    %v379 = vpack.c.b16 %v297, %v296
    %v380 = vpack.c.b16 %v299, %v298
    %v381 = vpack.c.b16 %v301, %v300
    %v382 = vpack.c.b16 %v303, %v302
    %v383 = vpack.c.b16 %v305, %v304
    %v384 = vpack.c.b16 %v307, %v306
    %v385 = vpack.c.b16 %v309, %v308
    %v386 = vpack.c.b16 %v311, %v310
    %v387 = vpack.c.b16 %v313, %v312
    %v388 = vpack.c.b16 %v315, %v314
    %v389 = vpack.c.b16 %v317, %v316
    %v390 = vpack.c.b16 %v319, %v318
    %v391 = vpack.c.b16 %v321, %v320
    %v392 = vpack.c.b16 %v323, %v322
    %v393 = vpack.c.b16 %v325, %v324
    %v394 = vpack.c.b16 %v327, %v326
    %v395 = vpack.c.b16 %v329, %v328
    %v396 = vpack.c.b16 %v331, %v330
    %v397 = vpack.c.b16 %v333, %v332
    %v398 = vpack.c.b16 %v335, %v334
    %v399 = vpack.c.b16 %v337, %v336
    %v400 = vpack.c.b16 %v339, %v338
    %v401 = vpack.c.b16 %v341, %v340
    %v402 = vpack.c.b16 %v343, %v342
    %v403 = vpack.c.b16 %v345, %v344
    %v404 = vpack.c.b16 %v347, %v346
    %v405 = vpack.c.b16 %v349, %v348
    %v406 = vpack.c.b16 %v351, %v350
    %v407 = vpack.c.b16 %v353, %v352
    %v408 = vpack.c.b16 %v355, %v354
    %v409 = vpack.c.b16 %v357, %v356
    %v410 = vpack.c.b16 %v359, %v358
    %v411 = vpack.c.b16 %v361, %v360
    %v412 = vpack.c.b16 %v363, %v362
    %vm462 = vcmask 130048
    %v464 = vsel %vm462, %v62, 0
    %466 = vmatprep.subr.bf16.mxu0 0
    %467 = vmatpush1.bf16.msra.mxu0 %v371
    %468 = vmatprep.subr.bf16.mxu0 0
    %469 = vmatpush1.bf16.msra.mxu0 %v370
    %470 = vmatprep.subr.bf16.mxu0 0
    %471 = vmatpush1.bf16.msra.mxu0 %v369
    %472 = vmatprep.subr.bf16.mxu0 0
    %473 = vmatpush1.bf16.msra.mxu0 %v368
    %474 = vmatprep.subr.bf16.mxu0 0
    %475 = vmatpush1.bf16.msra.mxu0 %v367
    %476 = vmatprep.subr.bf16.mxu0 0
    %477 = vmatpush1.bf16.msra.mxu0 %v366
    %478 = vmatprep.subr.bf16.mxu0 0
    %479 = vmatpush1.bf16.msra.mxu0 %v365
    %480 = vmatprep.subr.bf16.mxu0 0
    %481 = vmatpush1.bf16.msra.mxu0 %v364
    %482 = vmatprep.subr.bf16.mxu0 0
    %483 = vmatpush2.bf16.msra.mxu0 %v379
    %484 = vmatprep.subr.bf16.mxu0 0
    %485 = vmatpush2.bf16.msra.mxu0 %v378
    %486 = vmatprep.subr.bf16.mxu0 0
    %487 = vmatpush2.bf16.msra.mxu0 %v377
    %488 = vmatprep.subr.bf16.mxu0 0
    %489 = vmatpush2.bf16.msra.mxu0 %v376
    %490 = vmatprep.subr.bf16.mxu0 0
    %491 = vmatpush2.bf16.msra.mxu0 %v375
    %492 = vmatprep.subr.bf16.mxu0 0
    %493 = vmatpush2.bf16.msra.mxu0 %v374
    %494 = vmatprep.subr.bf16.mxu0 0
    %495 = vmatpush2.bf16.msra.mxu0 %v373
    %496 = vmatprep.subr.bf16.mxu0 0
    %497 = vmatpush2.bf16.msra.mxu0 %v372
    %498 = vmatprep.mubr.bf16.mxu0 %v57
    %499 = vmatmul.mubr.bf16.gmra.mxu0 %v56
    %v500 = vpop.f32.mrf.mxu0
    %v501 = vadd.f32 %v166, %v500
    %v502 = vpop.f32.mrf.mxu0
    %v503 = vpop.f32.mrf.mxu0
    %v504 = vpop.f32.mrf.mxu0
    %505 = vdwg.mxu0
    %506 = vmatprep.subr.bf16.mxu0 0
    %507 = vmatpush1.bf16.msra.mxu0 %v387
    %508 = vmatprep.subr.bf16.mxu0 0
    %509 = vmatpush1.bf16.msra.mxu0 %v386
    %510 = vmatprep.subr.bf16.mxu0 0
    %511 = vmatpush1.bf16.msra.mxu0 %v385
    %512 = vmatprep.subr.bf16.mxu0 0
    %513 = vmatpush1.bf16.msra.mxu0 %v384
    %514 = vmatprep.subr.bf16.mxu0 0
    %515 = vmatpush1.bf16.msra.mxu0 %v383
    %516 = vmatprep.subr.bf16.mxu0 0
    %517 = vmatpush1.bf16.msra.mxu0 %v382
    %518 = vmatprep.subr.bf16.mxu0 0
    %519 = vmatpush1.bf16.msra.mxu0 %v381
    %520 = vmatprep.subr.bf16.mxu0 0
    %521 = vmatpush1.bf16.msra.mxu0 %v380
    %522 = vmatprep.subr.bf16.mxu0 0
    %523 = vmatpush2.bf16.msra.mxu0 %v395
    %524 = vmatprep.subr.bf16.mxu0 0
    %525 = vmatpush2.bf16.msra.mxu0 %v394
    %526 = vmatprep.subr.bf16.mxu0 0
    %527 = vmatpush2.bf16.msra.mxu0 %v393
    %528 = vmatprep.subr.bf16.mxu0 0
    %529 = vmatpush2.bf16.msra.mxu0 %v392
    %530 = vmatprep.subr.bf16.mxu0 0
    %531 = vmatpush2.bf16.msra.mxu0 %v391
    %532 = vmatprep.subr.bf16.mxu0 0
    %533 = vmatpush2.bf16.msra.mxu0 %v390
    %534 = vmatprep.subr.bf16.mxu0 0
    %535 = vmatpush2.bf16.msra.mxu0 %v389
    %536 = vmatprep.subr.bf16.mxu0 0
    %537 = vmatpush2.bf16.msra.mxu0 %v388
    %538 = vmatprep.mubr.bf16.mxu0 %v59
    %539 = vmatmul.mubr.bf16.gmra.mxu0 %v58
    %v540 = vpop.f32.mrf.mxu0
    %v541 = vadd.f32 %v501, %v540
    %v542 = vpop.f32.mrf.mxu0
    %v543 = vpop.f32.mrf.mxu0
    %v544 = vpop.f32.mrf.mxu0
    %545 = vdwg.mxu0
    %546 = vmatprep.subr.bf16.mxu0 0
    %547 = vmatpush1.bf16.msra.mxu0 %v403
    %548 = vmatprep.subr.bf16.mxu0 0
    %549 = vmatpush1.bf16.msra.mxu0 %v402
    %550 = vmatprep.subr.bf16.mxu0 0
    %551 = vmatpush1.bf16.msra.mxu0 %v401
    %552 = vmatprep.subr.bf16.mxu0 0
    %553 = vmatpush1.bf16.msra.mxu0 %v400
    %554 = vmatprep.subr.bf16.mxu0 0
    %555 = vmatpush1.bf16.msra.mxu0 %v399
    %556 = vmatprep.subr.bf16.mxu0 0
    %557 = vmatpush1.bf16.msra.mxu0 %v398
    %558 = vmatprep.subr.bf16.mxu0 0
    %559 = vmatpush1.bf16.msra.mxu0 %v397
    %560 = vmatprep.subr.bf16.mxu0 0
    %561 = vmatpush1.bf16.msra.mxu0 %v396
    %562 = vmatprep.subr.bf16.mxu0 0
    %563 = vmatpush2.bf16.msra.mxu0 %v411
    %564 = vmatprep.subr.bf16.mxu0 0
    %565 = vmatpush2.bf16.msra.mxu0 %v410
    %566 = vmatprep.subr.bf16.mxu0 0
    %567 = vmatpush2.bf16.msra.mxu0 %v409
    %568 = vmatprep.subr.bf16.mxu0 0
    %569 = vmatpush2.bf16.msra.mxu0 %v408
    %570 = vmatprep.subr.bf16.mxu0 0
    %571 = vmatpush2.bf16.msra.mxu0 %v407
    %572 = vmatprep.subr.bf16.mxu0 0
    %573 = vmatpush2.bf16.msra.mxu0 %v406
    %574 = vmatprep.subr.bf16.mxu0 0
    %575 = vmatpush2.bf16.msra.mxu0 %v405
    %576 = vmatprep.subr.bf16.mxu0 0
    %577 = vmatpush2.bf16.msra.mxu0 %v404
    %578 = vmatprep.mubr.bf16.mxu0 %v61
    %579 = vmatmul.mubr.bf16.gmra.mxu0 %v60
    %v580 = vpop.f32.mrf.mxu0
    %v581 = vadd.f32 %v541, %v580
    %v582 = vpop.f32.mrf.mxu0
    %v583 = vpop.f32.mrf.mxu0
    %v584 = vpop.f32.mrf.mxu0
    %585 = vdwg.mxu0
    %586 = vmatprep.subr.bf16.mxu0 0
    %587 = vmatpush1.bf16.msra.mxu0 0
    %588 = vmatprep.subr.bf16.mxu0 0
    %589 = vmatpush1.bf16.msra.mxu0 0
    %590 = vmatprep.subr.bf16.mxu0 0
    %591 = vmatpush1.bf16.msra.mxu0 0
    %592 = vmatprep.subr.bf16.mxu0 0
    %593 = vmatpush1.bf16.msra.mxu0 0
    %594 = vmatprep.subr.bf16.mxu0 0
    %595 = vmatpush1.bf16.msra.mxu0 0
    %596 = vmatprep.subr.bf16.mxu0 0
    %597 = vmatpush1.bf16.msra.mxu0 0
    %598 = vmatprep.subr.bf16.mxu0 0
    %599 = vmatpush1.bf16.msra.mxu0 0
    %600 = vmatprep.subr.bf16.mxu0 0
    %601 = vmatpush1.bf16.msra.mxu0 %v412
    %602 = vmatprep.subr.bf16.mxu0 0
    %603 = vmatpush2.bf16.msra.mxu0 0
    %604 = vmatprep.subr.bf16.mxu0 0
    %605 = vmatpush2.bf16.msra.mxu0 0
    %606 = vmatprep.subr.bf16.mxu0 0
    %607 = vmatpush2.bf16.msra.mxu0 0
    %608 = vmatprep.subr.bf16.mxu0 0
    %609 = vmatpush2.bf16.msra.mxu0 0
    %610 = vmatprep.subr.bf16.mxu0 0
    %611 = vmatpush2.bf16.msra.mxu0 0
    %612 = vmatprep.subr.bf16.mxu0 0
    %613 = vmatpush2.bf16.msra.mxu0 0
    %614 = vmatprep.subr.bf16.mxu0 0
    %615 = vmatpush2.bf16.msra.mxu0 0
    %616 = vmatprep.subr.bf16.mxu0 0
    %617 = vmatpush2.bf16.msra.mxu0 0
    %618 = vmatprep.mubr.bf16.mxu0 0
    %619 = vmatmul.mubr.bf16.gmra.mxu0 %v464
    %v620 = vpop.f32.mrf.mxu0
    %v621 = vadd.f32 %v581, %v620
    %v622 = vpop.f32.mrf.mxu0
    %v623 = vpop.f32.mrf.mxu0
    %v624 = vpop.f32.mrf.mxu0
    %625 = vdwg.mxu0
    %626 = vst [vmem:[#allocation7] sm:$0xff] %v621
    // Predicated region
    $region22: #{tpu_custom_call.1} parent=1 // pred_check
      _
    $region23: #{tpu_custom_call.1} parent=1 // pred_check_branch
      %628 = sbr.rel (0) target = $region25
    $region24: #{tpu_custom_call.1} parent=1 // pred_region
      %s630 = ssub.s32 128, 128
      %631 = vsyncadd [#allocation4], %s630
      %s633 = sshll.u32 [#allocation7], 4
      %s634 = int_to_ptr.vmem [resolvable:$true] %s633
      %636 = dma.vmem_to_hbm [thread:$0]  %s634, 128, %s3, [#allocation4]
    $region25: #{tpu_custom_call.1} parent=1 // pred_fallthru
      _
    // Predicated region
    $region26: #{tpu_custom_call.1} parent=1 // pred_check
      _
    $region27: #{tpu_custom_call.1} parent=1 // pred_check_branch
      %638 = sbr.rel (0) target = $region29
    $region28: #{tpu_custom_call.1} parent=1 // pred_region
      %639 = dma.done [#allocation4], 128
    $region29: #{tpu_custom_call.1} parent=1 // pred_fallthru
      _
    %640 = vsyncpa [#allocation3], 1
    %641 = vsyncpa [#allocation6], 1
    %642 = vsyncpa [#allocation4], 1

</llo_original>
